<compile_context>
chip_gen: v5e
topology: v5e:2x2
jax: 0.10.0
libtpu: 0.0.40
codegen_flags: <defaults>
</compile_context>

<pallas_src>
import jax
import jax.numpy as jnp
from jax.experimental import pallas as pl
from jax.experimental.pallas import tpu as pltpu

EPS = 1e-5


def _round_up(x, m):
    return ((x + m - 1) // m) * m


# ----------------------------------------------------------------------------
# Kernel
# ----------------------------------------------------------------------------
def attention_block_kernel(g_ref, x_ref, wg_ref, wx_ref, b_ref, wp_ref, bp_ref,
                           out_ref):
    g = g_ref[...]                                    # (F_g, T)
    x = x_ref[...]                                    # (F_l, T)

    # Fused gating: BN scales are pre-folded into wg/wx; both conv biases and
    # BN offsets are pre-summed into a single bias (b_ref).  Accumulate the
    # second matmul into the first instead of materializing two intermediates.
    h = jnp.dot(wg_ref[...], g, preferred_element_type=jnp.float32)
    h = h + jnp.dot(wx_ref[...], x, preferred_element_type=jnp.float32)
    h = jnp.maximum(h + b_ref[...], 0.0)              # (F_int, T)

    # psi: 1x1 conv to a single channel.  An N=1 MXU matmul wastes the array;
    # use a VPU multiply + cross-sublane (XLU) reduce instead.
    s = jnp.sum(h * wp_ref[...], axis=0, keepdims=True) + bp_ref[...]   # (1, T)
    psi = jax.nn.sigmoid(s)

    # Attention-weighted skip connection (broadcast over channel sublanes).
    out_ref[...] = (x * psi).astype(out_ref.dtype)    # (F_l, T), lane-dense


# ----------------------------------------------------------------------------
# pallas_call wrapper
# ----------------------------------------------------------------------------
def attention_block_pallas(g_flat, x_flat, wg_t, wx_t, bias, wp_s, bias_p,
                           *, tile):
    B, F_g, HWp = g_flat.shape
    _, F_l, _ = x_flat.shape
    F_int = wg_t.shape[0]
    assert HWp % tile == 0

    # VMEM budget: double-buffered input/output tiles + intermediates + weights.
    est = 4 * tile * (2 * (F_g + 2 * F_l) + 3 * F_int)
    est += 4 * (F_int * (F_g + F_l) + 2 * F_int + 1)
    # Floor at the v6e/v7x default (32 MiB); cap at 48 MiB so we stay safely
    # inside v7x's 64 MiB physical VMEM (v5e/v6e have 128 MiB physical).
    vmem_limit = int(min(max(2 * est + (8 << 20), 32 << 20), 48 << 20))

    full = lambda b, j: (0, 0)
    pix = lambda b, j: (b, 0, j)

    return pl.pallas_call(
        attention_block_kernel,
        out_shape=jax.ShapeDtypeStruct((B, F_l, HWp), jnp.float32),
        grid_spec=pltpu.PrefetchScalarGridSpec(
            num_scalar_prefetch=0,
            grid=(B, HWp // tile),
            in_specs=[
                pl.BlockSpec((None, F_g, tile), pix),   # g, batch dim squeezed
                pl.BlockSpec((None, F_l, tile), pix),   # x
                pl.BlockSpec((F_int, F_g), full),       # folded W_g^T
                pl.BlockSpec((F_int, F_l), full),       # folded W_x^T
                pl.BlockSpec((F_int, 1), full),         # fused bias
                pl.BlockSpec((F_int, 1), full),         # folded psi weight
                pl.BlockSpec((1, 1), full),             # psi bias
            ],
            out_specs=pl.BlockSpec((None, F_l, tile), pix),
        ),
        compiler_params=pltpu.CompilerParams(
            dimension_semantics=("parallel", "parallel"),
            vmem_limit_bytes=vmem_limit,
        ),
    )(g_flat, x_flat, wg_t, wx_t, bias, wp_s, bias_p)


def fold_bn(bias, gamma, beta, mean, var):
    """Fold conv bias + inference-mode BatchNorm into (scale, offset)."""
    scale = gamma / jnp.sqrt(var + EPS)
    offset = (bias - mean) * scale + beta
    return scale, offset


def attention_block(g_nchw, x_nchw, params, *, tm=512):
    B, F_g, H, W = g_nchw.shape
    _, F_l, _, _ = x_nchw.shape
    F_int = params["wg"].shape[1]
    HW = H * W

    # Pixel tile: largest multiple of 128 <= tm that fits the VMEM budget and
    # isn't bigger than the (padded) pixel count.
    tile = min(_round_up(tm, 128), _round_up(HW, 128))
    bytes_per_col = 4 * (2 * (F_g + 2 * F_l) + 3 * F_int)
    while tile > 128 and tile * bytes_per_col > (40 << 20):
        tile -= 128
    HWp = _round_up(HW, tile)

    # NCHW -> (B, C, H*W): pure reshape, no transpose / extra HBM pass.
    g_flat = g_nchw.reshape(B, F_g, HW)
    x_flat = x_nchw.reshape(B, F_l, HW)
    if HWp != HW:
        g_flat = jnp.pad(g_flat, ((0, 0), (0, 0), (0, HWp - HW)))
        x_flat = jnp.pad(x_flat, ((0, 0), (0, 0), (0, HWp - HW)))

    # Fold conv bias + inference BatchNorm into the weights / a single bias.
    sg, og = fold_bn(params["bg"], params["gamma_g"], params["beta_g"],
                     params["mean_g"], params["var_g"])
    sx, ox = fold_bn(params["bx"], params["gamma_x"], params["beta_x"],
                     params["mean_x"], params["var_x"])
    sp, op_ = fold_bn(params["bp"], params["gamma_p"], params["beta_p"],
                      params["mean_p"], params["var_p"])

    wg_t = (params["wg"] * sg[None, :]).T            # (F_int, F_g)
    wx_t = (params["wx"] * sx[None, :]).T            # (F_int, F_l)
    bias = (og + ox).reshape(F_int, 1)               # fused W_g/W_x bias
    wp_s = params["wp"] * sp[None, :]                # (F_int, 1)
    bias_p = op_.reshape(1, 1)                       # (1, 1)

    out = attention_block_pallas(g_flat, x_flat, wg_t, wx_t, bias, wp_s,
                                 bias_p, tile=tile)
    return out[:, :, :HW].reshape(B, F_l, H, W)


# ----------------------------------------------------------------------------
# Pure-JAX reference (mirrors the PyTorch forward, BN in eval mode)
# ----------------------------------------------------------------------------
def attention_block_ref(g_nchw, x_nchw, params):
    def conv1x1(x, w, b):  # x: NCHW, w: (Cin, Cout)
        y = jnp.einsum("bchw,co->bohw", x, w)
        return y + b.reshape(1, -1, 1, 1)

    def bn(x, gamma, beta, mean, var):
        return (x - mean.reshape(1, -1, 1, 1)) / jnp.sqrt(
            var.reshape(1, -1, 1, 1) + EPS
        ) * gamma.reshape(1, -1, 1, 1) + beta.reshape(1, -1, 1, 1)

    g1 = bn(conv1x1(g_nchw, params["wg"], params["bg"]),
            params["gamma_g"], params["beta_g"], params["mean_g"], params["var_g"])
    x1 = bn(conv1x1(x_nchw, params["wx"], params["bx"]),
            params["gamma_x"], params["beta_x"], params["mean_x"], params["var_x"])
    h = jax.nn.relu(g1 + x1)
    psi = bn(conv1x1(h, params["wp"], params["bp"]),
             params["gamma_p"], params["beta_p"], params["mean_p"], params["var_p"])
    psi = jax.nn.sigmoid(psi)
    return x_nchw * psi


def init_params(key, F_g, F_l, F_int):
    ks = jax.random.split(key, 16)
    f32 = jnp.float32
    return {
        # W_g: Conv2d(F_g, F_int, 1) + BatchNorm2d(F_int)
        "wg": jax.random.normal(ks[0], (F_g, F_int), f32) * 0.1,
        "bg": jax.random.normal(ks[1], (F_int,), f32) * 0.1,
        "gamma_g": 1.0 + 0.1 * jax.random.normal(ks[2], (F_int,), f32),
        "beta_g": 0.1 * jax.random.normal(ks[3], (F_int,), f32),
        "mean_g": 0.1 * jax.random.normal(ks[4], (F_int,), f32),
        "var_g": 0.5 + jnp.abs(jax.random.normal(ks[5], (F_int,), f32)),
        # W_x: Conv2d(F_l, F_int, 1) + BatchNorm2d(F_int)
        "wx": jax.random.normal(ks[6], (F_l, F_int), f32) * 0.1,
        "bx": jax.random.normal(ks[7], (F_int,), f32) * 0.1,
        "gamma_x": 1.0 + 0.1 * jax.random.normal(ks[8], (F_int,), f32),
        "beta_x": 0.1 * jax.random.normal(ks[9], (F_int,), f32),
        "mean_x": 0.1 * jax.random.normal(ks[10], (F_int,), f32),
        "var_x": 0.5 + jnp.abs(jax.random.normal(ks[11], (F_int,), f32)),
        # psi: Conv2d(F_int, 1, 1) + BatchNorm2d(1) + Sigmoid
        "wp": jax.random.normal(ks[12], (F_int, 1), f32) * 0.1,
        "bp": jax.random.normal(ks[13], (1,), f32) * 0.1,
        "gamma_p": jnp.ones((1,), f32),
        "beta_p": jnp.zeros((1,), f32),
        "mean_p": 0.1 * jax.random.normal(ks[14], (1,), f32),
        "var_p": 0.5 + jnp.abs(jax.random.normal(ks[15], (1,), f32)),
    }


if __name__ == "__main__":
    B, F_g, F_l, F_int, H, W = 2, 4, 6, 8, 16, 16

    key = jax.random.PRNGKey(0)
    kg, kx, kp = jax.random.split(key, 3)
    g = jax.random.normal(kg, (B, F_g, H, W), jnp.float32)
    x = jax.random.normal(kx, (B, F_l, H, W), jnp.float32)
    params = init_params(kp, F_g, F_l, F_int)

    out = attention_block(g, x, params, tm=512)
    out = jax.block_until_ready(out)

    ref = attention_block_ref(g, x, params)
    assert out.shape == (B, F_l, H, W)
    assert jnp.allclose(out, ref, atol=1e-5, rtol=1e-5), (
        float(jnp.max(jnp.abs(out - ref))))

    # TODO(synk): optional bf16 I/O for v6e/v7x (halves HBM traffic) — kept
    # f32 here to preserve the 1e-5 tolerance against the f32 reference.
    print("KERNEL_OK")
</pallas_src>

<mosaic_0001>
module attributes {stable_mosaic.version = 11 : i64} {
  func.func @attention_block_kernel(%arg0: i32, %arg1: i32, %arg2: memref<1x4x256xf32, #tpu.memory_space<vmem>>, %arg3: memref<1x6x256xf32, #tpu.memory_space<vmem>>, %arg4: memref<8x4xf32, #tpu.memory_space<vmem>>, %arg5: memref<8x6xf32, #tpu.memory_space<vmem>>, %arg6: memref<8x1xf32, #tpu.memory_space<vmem>>, %arg7: memref<8x1xf32, #tpu.memory_space<vmem>>, %arg8: memref<1x1xf32, #tpu.memory_space<vmem>>, %arg9: memref<1x6x256xf32, #tpu.memory_space<vmem>>) attributes {dimension_semantics = [#tpu.dimension_semantics<parallel>, #tpu.dimension_semantics<parallel>], iteration_bounds = array<i64: 2, 1>, scalar_prefetch = 0 : i64, scratch_operands = 0 : i64, tpu.core_type = #tpu.core_type<tc>, window_params = [{transform_indices = @transform_0, window_bounds = array<i64: 1, 4, 256>}, {transform_indices = @transform_1, window_bounds = array<i64: 1, 6, 256>}, {pipeline_mode = #tpu.pipeline_mode<synchronous>, transform_indices = @transform_2, window_bounds = array<i64: 8, 4>}, {pipeline_mode = #tpu.pipeline_mode<synchronous>, transform_indices = @transform_3, window_bounds = array<i64: 8, 6>}, {pipeline_mode = #tpu.pipeline_mode<synchronous>, transform_indices = @transform_4, window_bounds = array<i64: 8, 1>}, {pipeline_mode = #tpu.pipeline_mode<synchronous>, transform_indices = @transform_5, window_bounds = array<i64: 8, 1>}, {pipeline_mode = #tpu.pipeline_mode<synchronous>, transform_indices = @transform_6, window_bounds = array<i64: 1, 1>}, {transform_indices = @transform_7, window_bounds = array<i64: 1, 6, 256>}]} {
    %c0 = arith.constant 0 : index
    %c0_0 = arith.constant 0 : index
    %c0_1 = arith.constant 0 : index
    %0 = vector.load %arg2[%c0, %c0_0, %c0_1] : memref<1x4x256xf32, #tpu.memory_space<vmem>>, vector<1x4x256xf32>
    %1 = vector.shape_cast %0 : vector<1x4x256xf32> to vector<4x256xf32>
    %c0_2 = arith.constant 0 : index
    %c0_3 = arith.constant 0 : index
    %c0_4 = arith.constant 0 : index
    %2 = vector.load %arg3[%c0_2, %c0_3, %c0_4] : memref<1x6x256xf32, #tpu.memory_space<vmem>>, vector<1x6x256xf32>
    %3 = vector.shape_cast %2 : vector<1x6x256xf32> to vector<6x256xf32>
    %c0_5 = arith.constant 0 : index
    %c0_6 = arith.constant 0 : index
    %4 = vector.load %arg4[%c0_5, %c0_6] : memref<8x4xf32, #tpu.memory_space<vmem>>, vector<8x4xf32>
    %cst = arith.constant dense<0.000000e+00> : vector<8x256xf32>
    %5 = tpu.matmul %4, %1, %cst {dimension_numbers = #tpu.dot_dimension_numbers<[1], [0], [0], [1], [0, 0, 1, 1], [], []>} : vector<8x4xf32>, vector<4x256xf32>, vector<8x256xf32> -> vector<8x256xf32>
    %c0_7 = arith.constant 0 : index
    %c0_8 = arith.constant 0 : index
    %6 = vector.load %arg5[%c0_7, %c0_8] : memref<8x6xf32, #tpu.memory_space<vmem>>, vector<8x6xf32>
    %cst_9 = arith.constant dense<0.000000e+00> : vector<8x256xf32>
    %7 = tpu.matmul %6, %3, %cst_9 {dimension_numbers = #tpu.dot_dimension_numbers<[1], [0], [0], [1], [0, 0, 1, 1], [], []>} : vector<8x6xf32>, vector<6x256xf32>, vector<8x256xf32> -> vector<8x256xf32>
    %8 = arith.addf %5, %7 : vector<8x256xf32>
    %c0_10 = arith.constant 0 : index
    %c0_11 = arith.constant 0 : index
    %9 = vector.load %arg6[%c0_10, %c0_11] : memref<8x1xf32, #tpu.memory_space<vmem>>, vector<8x1xf32>
    %10 = vector.broadcast %9 : vector<8x1xf32> to vector<8x256xf32>
    %11 = arith.addf %8, %10 : vector<8x256xf32>
    %cst_12 = arith.constant 0.000000e+00 : f32
    %12 = vector.broadcast %cst_12 : f32 to vector<8x256xf32>
    %13 = arith.maximumf %11, %12 : vector<8x256xf32>
    %c0_13 = arith.constant 0 : index
    %c0_14 = arith.constant 0 : index
    %14 = vector.load %arg7[%c0_13, %c0_14] : memref<8x1xf32, #tpu.memory_space<vmem>>, vector<8x1xf32>
    %15 = vector.broadcast %14 : vector<8x1xf32> to vector<8x256xf32>
    %16 = arith.mulf %13, %15 : vector<8x256xf32>
    %cst_15 = arith.constant dense<0.000000e+00> : vector<256xf32>
    %17 = vector.multi_reduction <add>, %16, %cst_15 [0] : vector<8x256xf32> to vector<256xf32>
    %18 = vector.shape_cast %17 : vector<256xf32> to vector<1x256xf32>
    %c0_16 = arith.constant 0 : index
    %c0_17 = arith.constant 0 : index
    %19 = vector.load %arg8[%c0_16, %c0_17] : memref<1x1xf32, #tpu.memory_space<vmem>>, vector<1x1xf32>
    %20 = vector.broadcast %19 : vector<1x1xf32> to vector<1x256xf32>
    %21 = arith.addf %18, %20 : vector<1x256xf32>
    %22 = arith.negf %21 : vector<1x256xf32>
    %23 = math.exp %22 : vector<1x256xf32>
    %cst_18 = arith.constant 1.000000e+00 : f32
    %24 = vector.broadcast %cst_18 : f32 to vector<1x256xf32>
    %25 = arith.addf %24, %23 : vector<1x256xf32>
    %26 = arith.divf %24, %25 : vector<1x256xf32>
    %27 = vector.broadcast %26 : vector<1x256xf32> to vector<6x256xf32>
    %28 = arith.mulf %3, %27 : vector<6x256xf32>
    %c0_19 = arith.constant 0 : index
    %c0_20 = arith.constant 0 : index
    %c0_21 = arith.constant 0 : index
    %29 = vector.load %arg9[%c0_19, %c0_20, %c0_21] : memref<1x6x256xf32, #tpu.memory_space<vmem>>, vector<1x6x256xf32>
    %30 = vector.shape_cast %29 : vector<1x6x256xf32> to vector<6x256xf32>
    %31 = vector.shape_cast %28 : vector<6x256xf32> to vector<1x6x256xf32>
    tpu.vector_store %arg9[%c0_19, %c0_20, %c0_21], %31 {strides = array<i32>} : memref<1x6x256xf32, #tpu.memory_space<vmem>>, vector<1x6x256xf32>,
    return
  }
  func.func @transform_0(%arg0: i32, %arg1: i32) -> (i32, i32, i32) {
    %c0_i32 = arith.constant 0 : i32
    %c0_i32_0 = arith.constant 0 : i32
    return %arg0, %c0_i32, %arg1 : i32, i32, i32
  }
  func.func @transform_1(%arg0: i32, %arg1: i32) -> (i32, i32, i32) {
    %c0_i32 = arith.constant 0 : i32
    %c0_i32_0 = arith.constant 0 : i32
    return %arg0, %c0_i32, %arg1 : i32, i32, i32
  }
  func.func @transform_2(%arg0: i32, %arg1: i32) -> (i32, i32) {
    %c0_i32 = arith.constant 0 : i32
    %c0_i32_0 = arith.constant 0 : i32
    %c0_i32_1 = arith.constant 0 : i32
    return %c0_i32, %c0_i32_0 : i32, i32
  }
  func.func @transform_3(%arg0: i32, %arg1: i32) -> (i32, i32) {
    %c0_i32 = arith.constant 0 : i32
    %c0_i32_0 = arith.constant 0 : i32
    %c0_i32_1 = arith.constant 0 : i32
    return %c0_i32, %c0_i32_0 : i32, i32
  }
  func.func @transform_4(%arg0: i32, %arg1: i32) -> (i32, i32) {
    %c0_i32 = arith.constant 0 : i32
    %c0_i32_0 = arith.constant 0 : i32
    %c0_i32_1 = arith.constant 0 : i32
    return %c0_i32, %c0_i32_0 : i32, i32
  }
  func.func @transform_5(%arg0: i32, %arg1: i32) -> (i32, i32) {
    %c0_i32 = arith.constant 0 : i32
    %c0_i32_0 = arith.constant 0 : i32
    %c0_i32_1 = arith.constant 0 : i32
    return %c0_i32, %c0_i32_0 : i32, i32
  }
  func.func @transform_6(%arg0: i32, %arg1: i32) -> (i32, i32) {
    %c0_i32 = arith.constant 0 : i32
    %c0_i32_0 = arith.constant 0 : i32
    %c0_i32_1 = arith.constant 0 : i32
    return %c0_i32, %c0_i32_0 : i32, i32
  }
  func.func @transform_7(%arg0: i32, %arg1: i32) -> (i32, i32, i32) {
    %c0_i32 = arith.constant 0 : i32
    %c0_i32_0 = arith.constant 0 : i32
    return %arg0, %c0_i32, %arg1 : i32, i32, i32
  }
}

</mosaic_0001>

<llo_original>
// kernel: tpu_custom_call.1
$region0: #{tpu_custom_call.1}
  #allocation0 [shape = 'u32[]', space=smem, size = 0x4, offset = 0x4, fixed_abs, tag = 'smem constant byte address 0x4 - core index']
  #allocation1 [shape = 'u32[72,128]{1,0:T(1,128)}', space=vmem, size = 0x9000, scoped, tag = 'internal scratch']
  #allocation2 [shape = 'f32[1,1]{1,0:T(1,128)S(1)}', space=vmem, size = 0x200, scoped, tag = 'scoped memory for tpu_custom_call.1']
  %s0 = inlined_call_operand.vmem [shape: f32[2,4,256], index: 0, kind: input, shape index: {}]
  %s1 = inlined_call_operand.vmem [shape: f32[2,6,256], index: 1, kind: input, shape index: {}]
  %s2 = inlined_call_operand.vmem [shape: f32[8,4], index: 2, kind: input, shape index: {}]
  %s3 = inlined_call_operand.vmem [shape: f32[8,6], index: 3, kind: input, shape index: {}]
  %s4 = inlined_call_operand.vmem [shape: f32[8,1], index: 4, kind: input, shape index: {}]
  %s5 = inlined_call_operand.vmem [shape: f32[8,1], index: 5, kind: input, shape index: {}]
  %s6 = inlined_call_operand.<no memory space> [shape: f32[1,1], index: 6, kind: input, shape index: {}]
  %s7 = inlined_call_operand.vmem [shape: f32[2,6,256], index: 7, kind: output, shape index: {}]
  %s8 = sld [smem:[#allocation0]]
  $region61: #{tpu_custom_call.1} parent=0
    _
  %s10 = ssub.s32 1, %s8
  %s11 = scalar_select 0, %s10, %s8
  %v12 = vstv %s6
  %13 = vst [vmem:[#allocation2] sm:$0x1] %v12
  loop: start=0, step=1, limit=4
  $region2: #{tpu_custom_call.1} parent=0 // loop_pre_header
    _
  $region3: #{tpu_custom_call.1} parent=0 // loop_header
    %s15 = sphi 0, %s19
    %p16 = scmp.ge.s32.totalorder %s15, 4
    %s22 = sphi 0, %s34
    %s23 = sphi 0, %s30
    %s24 = sphi 0, %s22
    %s25 = sphi 0, %s23
    %s26 = sphi 0, %s24
    %s27 = sphi 0, %s25
    %s39 = sphi 0, %s41
    %s42 = sphi 0, %s39
    %s43 = sphi 0, %s42
    %s59 = sphi 0, %s43
    %s67 = sphi 0, %s69
    %s70 = sphi 0, %s67
    %s71 = sphi 0, %s70
    %s87 = sphi 0, %s71
    %s91 = sphi 0, %s91
    %s93 = sphi 0, %s91
    %s94 = sphi 0, %s93
    %s108 = sphi 0, %s94
    %s112 = sphi 0, %s112
    %s114 = sphi 0, %s112
    %s115 = sphi 0, %s114
    %s129 = sphi 0, %s115
    %s133 = sphi 0, %s133
    %s135 = sphi 0, %s133
    %s136 = sphi 0, %s135
    %s150 = sphi 0, %s136
    %s154 = sphi 0, %s154
    %s156 = sphi 0, %s154
    %s157 = sphi 0, %s156
    %s171 = sphi 0, %s157
    %s175 = sphi 0, %s175
    %s177 = sphi 0, %s175
    %s178 = sphi 0, %s177
    %s192 = sphi 0, %s178
    %s200 = sphi 0, %s202
    %s203 = sphi 0, %s200
    %s204 = sphi 0, %s203
    %s220 = sphi 0, %s204
  $region4: #{tpu_custom_call.1} parent=0 // loop_header_branch
    %18 = sbr.rel (%p16) target = $region8
  $region5: #{tpu_custom_call.1} parent=0 // loop_body
    %s20 = ssub.s32 %s15, 1
    %s21 = ssub.s32 %s15, 2
    %s28 = sadd.s32 1, %s23
    %p29 = scmp.ge.s32.totalorder %s28, 1
    %s30 = scalar_select %p29, 0, %s28
    %s31 = sadd.s32 1, %s22
    %s32 = scalar_select %p29, %s31, %s22
    %p33 = scmp.ge.s32.totalorder %s32, 2
    %s34 = scalar_select %p33, 0, %s32
    %s35 = ssub.s32 %s22, %s34
    %s36 = ssub.s32 %s23, %s30
    %s37 = sor.u32 %s35, %s36
    %p38 = scmp.eq.s32.totalorder %s37, 0
    %s40 = sadd.s32 %s39, 1
    %s41 = scalar_select %p38, %s39, %s40
    %p44 = pneg %p38
    %p45 = scmp.eq.s32.totalorder %s15, 1
    %p46 = por %p44, %p45
    %p47 = scmp.ne.s32.totalorder %s39, %s42
    %p48 = scmp.eq.s32.totalorder %s15, 0
    %p49 = por %p47, %p48
    %p50 = scmp.ne.s32.totalorder %s39, %s42
    %p51 = scmp.eq.s32.totalorder %s20, 1
    %p52 = por %p50, %p51
    %p53 = scmp.ne.s32.totalorder %s42, %s43
    %p54 = scmp.eq.s32.totalorder %s20, 0
    %p55 = por %p53, %p54
    %p56 = scmp.ne.s32.totalorder %s42, %s43
    %p57 = scmp.eq.s32.totalorder %s21, 1
    %p58 = por %p56, %p57
    %p60 = scmp.ne.s32.totalorder %s43, %s59
    %p61 = scmp.eq.s32.totalorder %s21, 0
    %p62 = por %p60, %p61
    %s63 = ssub.s32 %s22, %s34
    %s64 = ssub.s32 %s23, %s30
    %s65 = sor.u32 %s63, %s64
    %p66 = scmp.eq.s32.totalorder %s65, 0
    %s68 = sadd.s32 %s67, 1
    %s69 = scalar_select %p66, %s67, %s68
    %p72 = pneg %p66
    %p73 = scmp.eq.s32.totalorder %s15, 1
    %p74 = por %p72, %p73
    %p75 = scmp.ne.s32.totalorder %s67, %s70
    %p76 = scmp.eq.s32.totalorder %s15, 0
    %p77 = por %p75, %p76
    %p78 = scmp.ne.s32.totalorder %s67, %s70
    %p79 = scmp.eq.s32.totalorder %s20, 1
    %p80 = por %p78, %p79
    %p81 = scmp.ne.s32.totalorder %s70, %s71
    %p82 = scmp.eq.s32.totalorder %s20, 0
    %p83 = por %p81, %p82
    %p84 = scmp.ne.s32.totalorder %s70, %s71
    %p85 = scmp.eq.s32.totalorder %s21, 1
    %p86 = por %p84, %p85
    %p88 = scmp.ne.s32.totalorder %s71, %s87
    %p89 = scmp.eq.s32.totalorder %s21, 0
    %p90 = por %p88, %p89
    %s92 = sadd.s32 %s91, 1
    %p95 = scmp.eq.s32.totalorder %s15, 1
    %p96 = scmp.ne.s32.totalorder %s91, %s93
    %p97 = scmp.eq.s32.totalorder %s15, 0
    %p98 = por %p96, %p97
    %p99 = scmp.ne.s32.totalorder %s91, %s93
    %p100 = scmp.eq.s32.totalorder %s20, 1
    %p101 = por %p99, %p100
    %p102 = scmp.ne.s32.totalorder %s93, %s94
    %p103 = scmp.eq.s32.totalorder %s20, 0
    %p104 = por %p102, %p103
    %p105 = scmp.ne.s32.totalorder %s93, %s94
    %p106 = scmp.eq.s32.totalorder %s21, 1
    %p107 = por %p105, %p106
    %p109 = scmp.ne.s32.totalorder %s94, %s108
    %p110 = scmp.eq.s32.totalorder %s21, 0
    %p111 = por %p109, %p110
    %s113 = sadd.s32 %s112, 1
    %p116 = scmp.eq.s32.totalorder %s15, 1
    %p117 = scmp.ne.s32.totalorder %s112, %s114
    %p118 = scmp.eq.s32.totalorder %s15, 0
    %p119 = por %p117, %p118
    %p120 = scmp.ne.s32.totalorder %s112, %s114
    %p121 = scmp.eq.s32.totalorder %s20, 1
    %p122 = por %p120, %p121
    %p123 = scmp.ne.s32.totalorder %s114, %s115
    %p124 = scmp.eq.s32.totalorder %s20, 0
    %p125 = por %p123, %p124
    %p126 = scmp.ne.s32.totalorder %s114, %s115
    %p127 = scmp.eq.s32.totalorder %s21, 1
    %p128 = por %p126, %p127
    %p130 = scmp.ne.s32.totalorder %s115, %s129
    %p131 = scmp.eq.s32.totalorder %s21, 0
    %p132 = por %p130, %p131
    %s134 = sadd.s32 %s133, 1
    %p137 = scmp.eq.s32.totalorder %s15, 1
    %p138 = scmp.ne.s32.totalorder %s133, %s135
    %p139 = scmp.eq.s32.totalorder %s15, 0
    %p140 = por %p138, %p139
    %p141 = scmp.ne.s32.totalorder %s133, %s135
    %p142 = scmp.eq.s32.totalorder %s20, 1
    %p143 = por %p141, %p142
    %p144 = scmp.ne.s32.totalorder %s135, %s136
    %p145 = scmp.eq.s32.totalorder %s20, 0
    %p146 = por %p144, %p145
    %p147 = scmp.ne.s32.totalorder %s135, %s136
    %p148 = scmp.eq.s32.totalorder %s21, 1
    %p149 = por %p147, %p148
    %p151 = scmp.ne.s32.totalorder %s136, %s150
    %p152 = scmp.eq.s32.totalorder %s21, 0
    %p153 = por %p151, %p152
    %s155 = sadd.s32 %s154, 1
    %p158 = scmp.eq.s32.totalorder %s15, 1
    %p159 = scmp.ne.s32.totalorder %s154, %s156
    %p160 = scmp.eq.s32.totalorder %s15, 0
    %p161 = por %p159, %p160
    %p162 = scmp.ne.s32.totalorder %s154, %s156
    %p163 = scmp.eq.s32.totalorder %s20, 1
    %p164 = por %p162, %p163
    %p165 = scmp.ne.s32.totalorder %s156, %s157
    %p166 = scmp.eq.s32.totalorder %s20, 0
    %p167 = por %p165, %p166
    %p168 = scmp.ne.s32.totalorder %s156, %s157
    %p169 = scmp.eq.s32.totalorder %s21, 1
    %p170 = por %p168, %p169
    %p172 = scmp.ne.s32.totalorder %s157, %s171
    %p173 = scmp.eq.s32.totalorder %s21, 0
    %p174 = por %p172, %p173
    %s176 = sadd.s32 %s175, 1
    %p179 = scmp.eq.s32.totalorder %s15, 1
    %p180 = scmp.ne.s32.totalorder %s175, %s177
    %p181 = scmp.eq.s32.totalorder %s15, 0
    %p182 = por %p180, %p181
    %p183 = scmp.ne.s32.totalorder %s175, %s177
    %p184 = scmp.eq.s32.totalorder %s20, 1
    %p185 = por %p183, %p184
    %p186 = scmp.ne.s32.totalorder %s177, %s178
    %p187 = scmp.eq.s32.totalorder %s20, 0
    %p188 = por %p186, %p187
    %p189 = scmp.ne.s32.totalorder %s177, %s178
    %p190 = scmp.eq.s32.totalorder %s21, 1
    %p191 = por %p189, %p190
    %p193 = scmp.ne.s32.totalorder %s178, %s192
    %p194 = scmp.eq.s32.totalorder %s21, 0
    %p195 = por %p193, %p194
    %s196 = ssub.s32 %s22, %s34
    %s197 = ssub.s32 %s23, %s30
    %s198 = sor.u32 %s196, %s197
    %p199 = scmp.eq.s32.totalorder %s198, 0
    %s201 = sadd.s32 %s200, 1
    %s202 = scalar_select %p199, %s200, %s201
    %p205 = pneg %p199
    %p206 = scmp.eq.s32.totalorder %s15, 1
    %p207 = por %p205, %p206
    %p208 = scmp.ne.s32.totalorder %s200, %s203
    %p209 = scmp.eq.s32.totalorder %s15, 0
    %p210 = por %p208, %p209
    %p211 = scmp.ne.s32.totalorder %s200, %s203
    %p212 = scmp.eq.s32.totalorder %s20, 1
    %p213 = por %p211, %p212
    %p214 = scmp.ne.s32.totalorder %s203, %s204
    %p215 = scmp.eq.s32.totalorder %s20, 0
    %p216 = por %p214, %p215
    %p217 = scmp.ne.s32.totalorder %s203, %s204
    %p218 = scmp.eq.s32.totalorder %s21, 1
    %p219 = por %p217, %p218
    %p221 = scmp.ne.s32.totalorder %s204, %s220
    %p222 = scmp.eq.s32.totalorder %s21, 0
    %p223 = por %p221, %p222
    %p224 = scmp.le.s32.totalorder 1, %s15
    %p225 = scmp.lt.s32.totalorder %s15, 3
    %p226 = pnand %p224, %p225
    %p227 = pneg %p226
    // Predicated region
    $region9: #{tpu_custom_call.1} parent=5 // pred_check
      _
    $region10: #{tpu_custom_call.1} parent=5 // pred_check_branch
      %229 = sbr.rel (%p226) target = $region12
    $region11: #{tpu_custom_call.1} parent=5 // pred_region
      %s230 = ssub.s32 %s15, 1
      // Predicated region
      $region13: #{tpu_custom_call.1} parent=11 // pred_check
        %p231 = pneg %p104
      $region14: #{tpu_custom_call.1} parent=11 // pred_check_branch
        %233 = sbr.rel (%p231) target = $region16
      $region15: #{tpu_custom_call.1} parent=11 // pred_region
        _
      $region16: #{tpu_custom_call.1} parent=11 // pred_fallthru
        _
      // Predicated region
      $region17: #{tpu_custom_call.1} parent=11 // pred_check
        %p234 = pneg %p125
      $region18: #{tpu_custom_call.1} parent=11 // pred_check_branch
        %236 = sbr.rel (%p234) target = $region20
      $region19: #{tpu_custom_call.1} parent=11 // pred_region
        _
      $region20: #{tpu_custom_call.1} parent=11 // pred_fallthru
        _
      // Predicated region
      $region21: #{tpu_custom_call.1} parent=11 // pred_check
        %p237 = pneg %p146
      $region22: #{tpu_custom_call.1} parent=11 // pred_check_branch
        %239 = sbr.rel (%p237) target = $region24
      $region23: #{tpu_custom_call.1} parent=11 // pred_region
        _
      $region24: #{tpu_custom_call.1} parent=11 // pred_fallthru
        _
      // Predicated region
      $region25: #{tpu_custom_call.1} parent=11 // pred_check
        %p240 = pneg %p167
      $region26: #{tpu_custom_call.1} parent=11 // pred_check_branch
        %242 = sbr.rel (%p240) target = $region28
      $region27: #{tpu_custom_call.1} parent=11 // pred_region
        _
      $region28: #{tpu_custom_call.1} parent=11 // pred_fallthru
        _
      // Predicated region
      $region29: #{tpu_custom_call.1} parent=11 // pred_check
        %p243 = pneg %p188
      $region30: #{tpu_custom_call.1} parent=11 // pred_check_branch
        %245 = sbr.rel (%p243) target = $region32
      $region31: #{tpu_custom_call.1} parent=11 // pred_region
        _
      $region32: #{tpu_custom_call.1} parent=11 // pred_fallthru
        _
    $region12: #{tpu_custom_call.1} parent=5 // pred_fallthru
      _
    %p246 = scmp.lt.s32.totalorder %s15, 2
    // Predicated region
    $region33: #{tpu_custom_call.1} parent=5 // pred_check
      %p247 = pneg %p246
    $region34: #{tpu_custom_call.1} parent=5 // pred_check_branch
      %249 = sbr.rel (%p247) target = $region36
    $region35: #{tpu_custom_call.1} parent=5 // pred_region
      // Predicated region
      $region37: #{tpu_custom_call.1} parent=35 // pred_check
        %p250 = pneg %p49
      $region38: #{tpu_custom_call.1} parent=35 // pred_check_branch
        %252 = sbr.rel (%p250) target = $region40
      $region39: #{tpu_custom_call.1} parent=35 // pred_region
        %s253 = smul.u32 2, %s23
        %p254 = scmp.lt.s32.totalorder %s22, 1
        %s255 = scalar_select %p254, %s22, 1
        %p256 = scmp.lt.s32.totalorder %s253, 1
        %s257 = scalar_select %p256, %s253, 1
        %s258 = smul.addr %s255, 2
        %s259 = sadd.s32 %s257, %s258
        %s260 = smul.addr %s259, 4
        %s261 = scalar_lea.vmem %s0, %s260
        %s262 = smul.u32 2, %s23
      $region40: #{tpu_custom_call.1} parent=35 // pred_fallthru
        _
      // Predicated region
      $region41: #{tpu_custom_call.1} parent=35 // pred_check
        %p263 = pneg %p77
      $region42: #{tpu_custom_call.1} parent=35 // pred_check_branch
        %265 = sbr.rel (%p263) target = $region44
      $region43: #{tpu_custom_call.1} parent=35 // pred_region
        %s266 = smul.u32 2, %s23
        %p267 = scmp.lt.s32.totalorder %s22, 1
        %s268 = scalar_select %p267, %s22, 1
        %p269 = scmp.lt.s32.totalorder %s266, 1
        %s270 = scalar_select %p269, %s266, 1
        %s271 = smul.addr %s268, 2
        %s272 = sadd.s32 %s270, %s271
        %s273 = smul.addr %s272, 8
        %s274 = scalar_lea.vmem %s1, %s273
        %s275 = smul.u32 2, %s23
      $region44: #{tpu_custom_call.1} parent=35 // pred_fallthru
        _
    $region36: #{tpu_custom_call.1} parent=5 // pred_fallthru
      _
    %p276 = scmp.le.s32.totalorder 1, %s15
    %p277 = scmp.lt.s32.totalorder %s15, 3
    %p278 = pnand %p276, %p277
    %p279 = pneg %p278
    // Predicated region
    $region45: #{tpu_custom_call.1} parent=5 // pred_check
      _
    $region46: #{tpu_custom_call.1} parent=5 // pred_check_branch
      %281 = sbr.rel (%p278) target = $region48
    $region47: #{tpu_custom_call.1} parent=5 // pred_region
      %s282 = ssub.s32 %s15, 1
      %s283 = smul.u32 2, %s25
      %p284 = scmp.lt.s32.totalorder %s24, 1
      %s285 = scalar_select %p284, %s24, 1
      %p286 = scmp.lt.s32.totalorder %s283, 1
      %s287 = scalar_select %p286, %s283, 1
      %s288 = smul.addr %s285, 2
      %s289 = sadd.s32 %s287, %s288
      %s290 = smul.addr %s289, 4
      %s291 = scalar_lea.vmem %s0, %s290
      %p292 = pneg %p55
      %p293 = pneg %p52
      %s294 = smul.u32 2, %s25
      %p295 = scmp.lt.s32.totalorder %s24, 1
      %s296 = scalar_select %p295, %s24, 1
      %p297 = scmp.lt.s32.totalorder %s294, 1
      %s298 = scalar_select %p297, %s294, 1
      %s299 = smul.addr %s296, 2
      %s300 = sadd.s32 %s298, %s299
      %s301 = smul.addr %s300, 8
      %s302 = scalar_lea.vmem %s1, %s301
      %p303 = pneg %p83
      %p304 = pneg %p80
      %p305 = pneg %p104
      %p306 = pneg %p101
      %p307 = pneg %p125
      %p308 = pneg %p122
      %p309 = pneg %p146
      %p310 = pneg %p143
      %p311 = pneg %p167
      %p312 = pneg %p164
      %p313 = pneg %p188
      %p314 = pneg %p185
      %p315 = pneg %p216
      %p316 = pneg %p213
      %s317 = smul.u32 2, %s25
      %p318 = scmp.lt.s32.totalorder %s24, 1
      %s319 = scalar_select %p318, %s24, 1
      %p320 = scmp.lt.s32.totalorder %s317, 1
      %s321 = scalar_select %p320, %s317, 1
      %s322 = smul.addr %s319, 2
      %s323 = sadd.s32 %s321, %s322
      %s324 = smul.addr %s323, 8
      %s325 = scalar_lea.vmem %s7, %s324
      %s326 = smul.u32 2, %s25
      %p327 = scmp.lt.s32.totalorder %s24, 1
      %s328 = scalar_select %p327, %s24, 1
      %p329 = scmp.lt.s32.totalorder %s326, 1
      %s330 = scalar_select %p329, %s326, 1
      %s331 = smul.addr %s328, 2
      %s332 = sadd.s32 %s330, %s331
      %s333 = smul.addr %s332, 4
      %s334 = scalar_lea.vmem %s0, %s333
      %s335 = smul.u32 2, %s25
      %s336 = smul.u32 2, %s25
      %p337 = scmp.lt.s32.totalorder %s24, 1
      %s338 = scalar_select %p337, %s24, 1
      %p339 = scmp.lt.s32.totalorder %s336, 1
      %s340 = scalar_select %p339, %s336, 1
      %s341 = smul.addr %s338, 2
      %s342 = sadd.s32 %s340, %s341
      %s343 = smul.addr %s342, 8
      %s344 = scalar_lea.vmem %s1, %s343
      %s345 = smul.u32 2, %s25
      %s346 = smul.u32 2, %s25
      %p347 = scmp.lt.s32.totalorder %s24, 1
      %s348 = scalar_select %p347, %s24, 1
      %p349 = scmp.lt.s32.totalorder %s346, 1
      %s350 = scalar_select %p349, %s346, 1
      %s351 = smul.addr %s348, 2
      %s352 = sadd.s32 %s350, %s351
      %s353 = smul.addr %s352, 8
      %s354 = scalar_lea.vmem %s7, %s353
      %s355 = smul.u32 2, %s25
      %v356 = vld [vmem:[%s334] sm:$0xff]
      %v357 = vld [vmem:[%s344] sm:$0x3f]
      %v358 = vld [vmem:[%s344 + $0x8] sm:$0x3f]
      %v359 = vld [vmem:[%s2] sm:$0xff]
      %v360 = vld [vmem:[%s3] sm:$0xff]
      %vm361 = vcmask 48128
      %v363 = vsel %vm361, %v360, 0
      %vm365 = vcmask 1045504
      %v367 = vsel %vm365, %v357, 0
      %v370 = vsel %vm365, %v358, 0
      %372 = vmatpush.msra.mxu0 0.0
      %373 = vmatpush.msra.mxu0 0.0
      %374 = vmatpush.msra.mxu0 0.0
      %375 = vmatpush.msra.mxu0 0.0
      %376 = vmatpush.msra.mxu0 0.0
      %377 = vmatpush.msra.mxu0 0.0
      %378 = vmatpush.msra.mxu0 0.0
      %379 = vmatpush.msra.mxu0 0.0
      %380 = vmatpush.msra.mxu0 0.0
      %381 = vmatpush.msra.mxu0 0.0
      %382 = vmatpush.msra.mxu0 0.0
      %383 = vmatpush.msra.mxu0 0.0
      %384 = vmatpush.msra.mxu0 0.0
      %385 = vmatpush.msra.mxu0 0.0
      %386 = vmatpush.msra.mxu0 0.0
      %387 = vmatpush.msra.mxu0 %v367
      %388 = vmatmul.f32.gmra.mxu0 %v363
      %v389 = vpop.f32.mrf.mxu0
      %v390 = vadd.f32 0.0, %v389
      %391 = vdwg.mxu0
      %392 = vmatpush.msra.mxu0 0.0
      %393 = vmatpush.msra.mxu0 0.0
      %394 = vmatpush.msra.mxu0 0.0
      %395 = vmatpush.msra.mxu0 0.0
      %396 = vmatpush.msra.mxu0 0.0
      %397 = vmatpush.msra.mxu0 0.0
      %398 = vmatpush.msra.mxu0 0.0
      %399 = vmatpush.msra.mxu0 0.0
      %400 = vmatpush.msra.mxu0 0.0
      %401 = vmatpush.msra.mxu0 0.0
      %402 = vmatpush.msra.mxu0 0.0
      %403 = vmatpush.msra.mxu0 0.0
      %404 = vmatpush.msra.mxu0 0.0
      %405 = vmatpush.msra.mxu0 0.0
      %406 = vmatpush.msra.mxu0 0.0
      %407 = vmatpush.msra.mxu0 %v370
      %408 = vmatmul.f32.gmra.mxu0 %v363
      %v409 = vpop.f32.mrf.mxu0
      %v410 = vadd.f32 0.0, %v409
      %411 = vdwg.mxu0
      %413 = vst [vmem:[#allocation1] ss:$2 sm:$0xff] %v356
      %v414 = vld.sshfl [vmem:[#allocation1] sm:$0xff pattern:$0x75316420]
      %v415 = vld.sshfl [vmem:[#allocation1 + $0x8] sm:$0xff pattern:$0x75316420]
      %vm416 = vcmask 31744
      %v418 = vsel %vm416, %v359, 0
      %vm420 = vcmask 1043456
      %v421 = vsel %vm420, %v414, 0
      %v423 = vsel %vm420, %v415, 0
      %425 = vmatpush.msra.mxu0 0.0
      %426 = vmatpush.msra.mxu0 0.0
      %427 = vmatpush.msra.mxu0 0.0
      %428 = vmatpush.msra.mxu0 0.0
      %429 = vmatpush.msra.mxu0 0.0
      %430 = vmatpush.msra.mxu0 0.0
      %431 = vmatpush.msra.mxu0 0.0
      %432 = vmatpush.msra.mxu0 0.0
      %433 = vmatpush.msra.mxu0 0.0
      %434 = vmatpush.msra.mxu0 0.0
      %435 = vmatpush.msra.mxu0 0.0
      %436 = vmatpush.msra.mxu0 0.0
      %437 = vmatpush.msra.mxu0 0.0
      %438 = vmatpush.msra.mxu0 0.0
      %439 = vmatpush.msra.mxu0 0.0
      %440 = vmatpush.msra.mxu0 %v421
      %441 = vmatmul.f32.gmra.mxu0 %v418
      %v442 = vpop.f32.mrf.mxu0
      %v443 = vadd.f32 %v390, %v442
      %444 = vdwg.mxu0
      %445 = vmatpush.msra.mxu0 0.0
      %446 = vmatpush.msra.mxu0 0.0
      %447 = vmatpush.msra.mxu0 0.0
      %448 = vmatpush.msra.mxu0 0.0
      %449 = vmatpush.msra.mxu0 0.0
      %450 = vmatpush.msra.mxu0 0.0
      %451 = vmatpush.msra.mxu0 0.0
      %452 = vmatpush.msra.mxu0 0.0
      %453 = vmatpush.msra.mxu0 0.0
      %454 = vmatpush.msra.mxu0 0.0
      %455 = vmatpush.msra.mxu0 0.0
      %456 = vmatpush.msra.mxu0 0.0
      %457 = vmatpush.msra.mxu0 0.0
      %458 = vmatpush.msra.mxu0 0.0
      %459 = vmatpush.msra.mxu0 0.0
      %460 = vmatpush.msra.mxu0 %v423
      %461 = vmatmul.f32.gmra.mxu0 %v418
      %v462 = vpop.f32.mrf.mxu0
      %v463 = vadd.f32 %v410, %v462
      %464 = vdwg.mxu0
      %v465 = vld [vmem:[%s4] sm:$0xff]
      %467 = vset.pattern.permute.xlu0 0
      %468 = vperm.xlu0 %467, %v465
      %v469 = vpop.permute.xlu0 %468
      %v471 = vadd.f32 %v443, %v469
      %v472 = vadd.f32 %v463, %v469
      %v473 = vmax.f32 %v471, 0.0
      %v474 = vmax.f32 %v472, 0.0
      %v475 = vld [vmem:[%s5] sm:$0xff]
      %477 = vset.pattern.permute.xlu0 0
      %478 = vperm.xlu0 %477, %v475
      %v479 = vpop.permute.xlu0 %478
      %v481 = vmul.f32 %v473, %v479
      %v482 = vmul.f32 %v474, %v479
      %v483 = vrot.slane %v481, 4
      %v484 = vadd.f32 %v481, %v483
      %v485 = vrot.slane %v484, 2
      %v486 = vadd.f32 %v484, %v485
      %v487 = vrot.slane %v486, 1
      %v488 = vadd.f32 %v486, %v487
      %v489 = vrot.slane %v482, 4
      %v490 = vadd.f32 %v482, %v489
      %v491 = vrot.slane %v490, 2
      %v492 = vadd.f32 %v490, %v491
      %v493 = vrot.slane %v492, 1
      %v494 = vadd.f32 %v492, %v493
      %v495 = vld [vmem:[#allocation2] sm:$0x1]
      %497 = vset.pattern.permute.xlu0 0
      %498 = vperm.xlu0 %497, %v495
      %v499 = vpop.permute.xlu0 %498
      %v501 = vperm.slane %v499, 0
      %v502 = vadd.f32 %v488, %v501
      %v503 = vadd.f32 %v494, %v501
      %v504 = vxor.u32 %v502, 2147483648
      %v505 = vxor.u32 %v503, 2147483648
      %v506 = vmul.f32 %v504, 1.442695
      %v507 = vpow.pop %v506
      %v508 = vmul.f32 %v505, 1.442695
      %v509 = vpow.pop %v508
      %v510 = vadd.f32 %v507, 1.0
      %v511 = vadd.f32 %v509, 1.0
      %v512 = vrcp.pop %v510
      %v513 = vmul.f32 %v510, %v512
      %v514 = vsub.f32 1.0, %v513
      %v515 = vmul.f32 %v512, %v514
      %v516 = vadd.f32 %v512, %v515
      %vm517 = vweird.f32 %v510
      %vm518 = vweird.f32 %v512
      %vm519 = vmor %vm517, %vm518
      %v520 = vsel %vm519, %v512, %v516
      %v521 = vand.u32 2147483647, %v510
      %vm522 = vcmp.eq.f32.partialorder %v521, 8.507059e+37
      %v523 = vand.u32 %v510, 2147483648
      %v524 = vor.u32 1.1754944e-38, %v523
      %v525 = vsel %vm522, %v524, %v520
      %v526 = vmul.f32 1.0, %v525
      %v527 = vrcp.pop %v511
      %v528 = vmul.f32 %v511, %v527
      %v529 = vsub.f32 1.0, %v528
      %v530 = vmul.f32 %v527, %v529
      %v531 = vadd.f32 %v527, %v530
      %vm532 = vweird.f32 %v511
      %vm533 = vweird.f32 %v527
      %vm534 = vmor %vm532, %vm533
      %v535 = vsel %vm534, %v527, %v531
      %v536 = vand.u32 2147483647, %v511
      %vm537 = vcmp.eq.f32.partialorder %v536, 8.507059e+37
      %v538 = vand.u32 %v511, 2147483648
      %v539 = vor.u32 1.1754944e-38, %v538
      %v540 = vsel %vm537, %v539, %v535
      %v541 = vmul.f32 1.0, %v540
      %v542 = vmul.f32 %v357, %v526
      %v543 = vmul.f32 %v358, %v541
      %544 = vst [vmem:[%s354] sm:$0x3f] %v542
      %545 = vst [vmem:[%s354 + $0x8] sm:$0x3f] %v543
      %s546 = smul.u32 2, %s25
      %p547 = scmp.lt.s32.totalorder %s24, 1
      %s548 = scalar_select %p547, %s24, 1
      %p549 = scmp.lt.s32.totalorder %s546, 1
      %s550 = scalar_select %p549, %s546, 1
      %s551 = smul.addr %s548, 2
      %s552 = sadd.s32 %s550, %s551
      %s553 = smul.addr %s552, 8
      %s554 = scalar_lea.vmem %s7, %s553
      // Predicated region
      $region49: #{tpu_custom_call.1} parent=47 // pred_check
        %p555 = pneg %p213
      $region50: #{tpu_custom_call.1} parent=47 // pred_check_branch
        %557 = sbr.rel (%p555) target = $region52
      $region51: #{tpu_custom_call.1} parent=47 // pred_region
        %s558 = smul.u32 2, %s25
      $region52: #{tpu_custom_call.1} parent=47 // pred_fallthru
        _
    $region48: #{tpu_custom_call.1} parent=5 // pred_fallthru
      _
    %p559 = scmp.le.s32.totalorder 2, %s15
    // Predicated region
    $region53: #{tpu_custom_call.1} parent=5 // pred_check
      %p560 = pneg %p559
    $region54: #{tpu_custom_call.1} parent=5 // pred_check_branch
      %562 = sbr.rel (%p560) target = $region56
    $region55: #{tpu_custom_call.1} parent=5 // pred_region
      %s563 = ssub.s32 %s15, 2
      // Predicated region
      $region57: #{tpu_custom_call.1} parent=55 // pred_check
        %p564 = pneg %p219
      $region58: #{tpu_custom_call.1} parent=55 // pred_check_branch
        %566 = sbr.rel (%p564) target = $region60
      $region59: #{tpu_custom_call.1} parent=55 // pred_region
        %s567 = smul.u32 2, %s27
        %p568 = scmp.lt.s32.totalorder %s26, 1
        %s569 = scalar_select %p568, %s26, 1
        %p570 = scmp.lt.s32.totalorder %s567, 1
        %s571 = scalar_select %p570, %s567, 1
        %s572 = smul.addr %s569, 2
        %s573 = sadd.s32 %s571, %s572
        %s574 = smul.addr %s573, 8
        %s575 = scalar_lea.vmem %s7, %s574
      $region60: #{tpu_custom_call.1} parent=55 // pred_fallthru
        _
    $region56: #{tpu_custom_call.1} parent=5 // pred_fallthru
      _
  $region6: #{tpu_custom_call.1} parent=0 // loop_footer
    %s19 = sadd.s32 1, %s15
  $region7: #{tpu_custom_call.1} parent=0 // loop_footer_branch
    %14 = sbr.rel target = $region3
  $region8: #{tpu_custom_call.1} parent=0 // loop_exit
    _

</llo_original>
